<compile_context>
chip_gen: v7x
topology: tpu7x:2x2x1
jax: 0.10.0
libtpu: 0.0.40
codegen_flags: <defaults>
</compile_context>

<pallas_src>
import jax
import jax.numpy as jnp
from jax.experimental import pallas as pl
from jax.experimental.pallas import tpu as pltpu

LOW = 0.0
HIGH = 1.0

_MAX_BLOCK_BYTES = 8 << 20    # per array, per grid step (8 MiB)
_VMEM_LIMIT_BYTES = 40 << 20  # 4 x 8 MiB (in+out, double-buffered) + headroom


def _dblu_kernel(x_ref, o_ref):
    x = x_ref[...]
    # clip(x, 0, 1) then square == where(x>1, 1, where(x<0, 0, x*x)),
    # including NaN behavior. 3 VPU ops per vreg; kernel is HBM-DMA bound.
    c = jnp.clip(x, jnp.asarray(LOW, x.dtype), jnp.asarray(HIGH, x.dtype))
    o_ref[...] = c * c


def _round_up(a: int, b: int) -> int:
    return (a + b - 1) // b * b


def _pick_cols(n: int) -> int:
    """Largest multiple of 128 (<= 1024) that divides n (n % 128 == 0)."""
    m = n // 128
    for d in (8, 7, 6, 5, 4, 3, 2, 1):
        if m % d == 0:
            return 128 * d
    return 128


def _pick_tile_rows(rows: int, cols: int, itemsize: int, sub: int) -> int:
    max_tr = max(sub, (_MAX_BLOCK_BYTES // (cols * itemsize)) // sub * sub)
    if rows <= 4 * sub:
        # Tiny input: single (or few) full-height blocks. block == full dim is
        # always a legal block shape regardless of sublane divisibility.
        return rows
    if rows <= max_tr:
        # Aim for >= 4 grid steps (v7x has 2 TCs; keep double-buffering busy).
        return min(_round_up(pl.cdiv(rows, 4), sub), max_tr)
    return max_tr


def _run_2d(x2d: jax.Array) -> jax.Array:
    rows, cols = x2d.shape
    itemsize = jnp.dtype(x2d.dtype).itemsize
    sub = max(8, 32 // itemsize)  # sublane packing multiple for this dtype
    tile_rows = _pick_tile_rows(rows, cols, itemsize, sub)
    grid = (pl.cdiv(rows, tile_rows),)  # ragged final block is masked by Pallas
    return pl.pallas_call(
        _dblu_kernel,
        out_shape=jax.ShapeDtypeStruct((rows, cols), x2d.dtype),
        grid=grid,
        in_specs=[pl.BlockSpec((tile_rows, cols), lambda i: (i, 0))],
        out_specs=pl.BlockSpec((tile_rows, cols), lambda i: (i, 0)),
        compiler_params=pltpu.CompilerParams(
            dimension_semantics=("parallel",),
            vmem_limit_bytes=_VMEM_LIMIT_BYTES),
        cost_estimate=pl.CostEstimate(
            flops=3 * rows * cols, transcendentals=0,
            bytes_accessed=2 * rows * cols * itemsize),
    )(x2d)


@jax.jit
def double_block_unlinear_unit(x: jax.Array) -> jax.Array:
    """Applies DoubleBlockUnLinearUnit elementwise (any shape; NCHW typical)."""
    orig_shape = x.shape
    n = x.size
    if n == 0:
        return x

    if n % 128 == 0:
        # Fast path: free reshape to a lane-dense slab, zero wrapper traffic.
        cols = _pick_cols(n)
        out2d = _run_2d(x.reshape(n // cols, cols))
        return out2d.reshape(orig_shape)

    # Ragged fallback (n not a multiple of 128): minimal pad to 128 lanes.
    # Pad value 0 maps to 0 through the op; padded region is sliced off below.
    pad = (-n) % 128
    flat = jnp.pad(x.reshape(-1), (0, pad))
    out2d = _run_2d(flat.reshape((n + pad) // 128, 128))
    return out2d.reshape(-1)[:n].reshape(orig_shape)


def _reference(x: jax.Array) -> jax.Array:
    sq = x ** 2
    out = jnp.where(x > HIGH, jnp.asarray(HIGH, x.dtype), sq)
    out = jnp.where(x < LOW, jnp.asarray(LOW, x.dtype), out)
    return out


if __name__ == "__main__":
    key = jax.random.PRNGKey(0)
    # NCHW input, values spanning below 0, inside [0, 1], and above 1.
    x = jax.random.uniform(key, (2, 4, 16, 16), dtype=jnp.float32,
                           minval=-1.5, maxval=2.5)
    y = jax.block_until_ready(double_block_unlinear_unit(x))
    y_ref = _reference(x)
    assert y.shape == x.shape and y.dtype == x.dtype
    assert jnp.allclose(y, y_ref, atol=1e-6, rtol=1e-6), "mismatch vs reference"

    # Also exercise the ragged-size (size % 128 != 0) fallback path.
    x2 = jax.random.uniform(jax.random.PRNGKey(1), (3, 5, 7), dtype=jnp.float32,
                            minval=-2.0, maxval=2.0)
    y2 = jax.block_until_ready(double_block_unlinear_unit(x2))
    assert jnp.allclose(y2, _reference(x2), atol=1e-6, rtol=1e-6), \
        "mismatch vs reference (ragged path)"

    print("KERNEL_OK")
</pallas_src>

<mosaic_0001>
module attributes {stable_mosaic.version = 11 : i64} {
  func.func @_dblu_kernel(%arg0: i32, %arg1: memref<2x1024xf32, #tpu.memory_space<vmem>>, %arg2: memref<2x1024xf32, #tpu.memory_space<vmem>>) attributes {dimension_semantics = [#tpu.dimension_semantics<parallel>], iteration_bounds = array<i64: 1>, scalar_prefetch = 0 : i64, scratch_operands = 0 : i64, tpu.core_type = #tpu.core_type<tc>, window_params = [{transform_indices = @transform_0, window_bounds = array<i64: 2, 1024>}, {transform_indices = @transform_1, window_bounds = array<i64: 2, 1024>}]} {
    %c0 = arith.constant 0 : index
    %c0_0 = arith.constant 0 : index
    %0 = vector.load %arg1[%c0, %c0_0] : memref<2x1024xf32, #tpu.memory_space<vmem>>, vector<2x1024xf32>
    %cst = arith.constant 0.000000e+00 : f32
    %cst_1 = arith.constant 1.000000e+00 : f32
    %1 = vector.broadcast %cst : f32 to vector<2x1024xf32>
    %2 = arith.maximumf %1, %0 : vector<2x1024xf32>
    %3 = vector.broadcast %cst_1 : f32 to vector<2x1024xf32>
    %4 = arith.minimumf %3, %2 : vector<2x1024xf32>
    %5 = arith.mulf %4, %4 : vector<2x1024xf32>
    %c0_2 = arith.constant 0 : index
    %c0_3 = arith.constant 0 : index
    %6 = vector.load %arg2[%c0_2, %c0_3] : memref<2x1024xf32, #tpu.memory_space<vmem>>, vector<2x1024xf32>
    tpu.vector_store %arg2[%c0_2, %c0_3], %5 {strides = array<i32>} : memref<2x1024xf32, #tpu.memory_space<vmem>>, vector<2x1024xf32>,
    return
  }
  func.func @transform_0(%arg0: i32) -> (i32, i32) {
    %c0_i32 = arith.constant 0 : i32
    %c0_i32_0 = arith.constant 0 : i32
    return %arg0, %c0_i32 : i32, i32
  }
  func.func @transform_1(%arg0: i32) -> (i32, i32) {
    %c0_i32 = arith.constant 0 : i32
    %c0_i32_0 = arith.constant 0 : i32
    return %arg0, %c0_i32 : i32, i32
  }
}

</mosaic_0001>

<llo_original>
// kernel: double_block_unlinear_unit.1
$region0: #{double_block_unlinear_unit.1}
  #allocation0 [shape = 'u32[]', space=smem, size = 0x4, offset = 0x4, fixed_abs, tag = 'smem constant byte address 0x4 - core index']
  #allocation1 [shape = 'u32[144,128]{1,0:T(1,128)}', space=vmem, size = 0x12000, scoped, tag = 'internal scratch']
  %s0 = inlined_call_operand.vmem [shape: f32[2,1024], index: 0, kind: input, shape index: {}]
  %s1 = inlined_call_operand.vmem [shape: f32[2,1024], index: 1, kind: output, shape index: {}]
  %s2 = sld [smem:[#allocation0]]
  $region14: #{double_block_unlinear_unit.1} parent=0
    _
  %s4 = ssub.s32 1, %s2
  %s5 = scalar_select 0, %s4, %s2
  // Predicated region
  $region2: #{double_block_unlinear_unit.1} parent=0 // pred_check
    _
  $region3: #{double_block_unlinear_unit.1} parent=0 // pred_check_branch
    %7 = sbr.rel (0) target = $region5
  $region4: #{double_block_unlinear_unit.1} parent=0 // pred_region
    _
  $region5: #{double_block_unlinear_unit.1} parent=0 // pred_fallthru
    _
  %v8 = vld [vmem:[%s0] sm:$0xff]
  %v9 = vld [vmem:[%s0 + $0x8] sm:$0xff]
  %v10 = vmax.f32 %v8, 0.0
  %v11 = vmax.f32 %v9, 0.0
  %v12 = vmin.f32 %v10, 1.0
  %v13 = vmin.f32 %v11, 1.0
  %v14 = vmul.f32 %v12, %v12
  %v15 = vmul.f32 %v13, %v13
  %16 = vst [vmem:[%s1] sm:$0xff] %v14
  %17 = vst [vmem:[%s1 + $0x8] sm:$0xff] %v15
  // Predicated region
  $region6: #{double_block_unlinear_unit.1} parent=0 // pred_check
    _
  $region7: #{double_block_unlinear_unit.1} parent=0 // pred_check_branch
    %19 = sbr.rel (0) target = $region9
  $region8: #{double_block_unlinear_unit.1} parent=0 // pred_region
    _
  $region9: #{double_block_unlinear_unit.1} parent=0 // pred_fallthru
    _
  // Predicated region
  $region10: #{double_block_unlinear_unit.1} parent=0 // pred_check
    _
  $region11: #{double_block_unlinear_unit.1} parent=0 // pred_check_branch
    %21 = sbr.rel (0) target = $region13
  $region12: #{double_block_unlinear_unit.1} parent=0 // pred_region
    _
  $region13: #{double_block_unlinear_unit.1} parent=0 // pred_fallthru
    _

</llo_original>
